<compile_context>
chip_gen: v7x
topology: tpu7x:2x2x1
jax: 0.10.0
libtpu: 0.0.40
codegen_flags: <defaults>
</compile_context>

<pallas_src>
import functools

import jax
import jax.numpy as jnp
from jax.experimental import pallas as pl
from jax.experimental.pallas import tpu as pltpu

# ----------------------------- module "buffers" -----------------------------
EPS            = 1e-5
BETA           = 1.0          # unused in forward (kept for parity)
P_I_SCALE_W    = 1e-4         # unused in forward (kept for parity)
P_P_SCALE_W    = 1e-4         # unused in forward (kept for parity)
P_BG_SCALE_W   = 1e-4
RECON_SCALE    = 0.0
TV_LOSS_SCALE  = 0.1
MC_SAMPLES     = 8            # module default is 100; kept small for the demo
MC_CHUNK       = 8            # MC samples per in-kernel chunk (bounds vregs)

# deterministic Laplace priors (stand-ins for p_p / p_I / p_bg, see TODO above)
PRIOR_P_LOC,  PRIOR_P_SCALE  = 0.0, 1.0
PRIOR_I_LOC,  PRIOR_I_SCALE  = 0.0, 1.0
PRIOR_BG_LOC, PRIOR_BG_SCALE = 0.0, 1.0

# fixed pixel geometry (from the module's reshape(-1, 3, 21, 21))
_D, _H, _W = 3, 21, 21
_HW = _H * _W                 # 441
_P = _D * _HW                 # 1323

# lanes of the per-batch (1, 128) output row
_LANE_NLL, _LANE_KL, _LANE_TV, _LANE_RECON = 0, 1, 2, 3


# --------------------------- in-kernel MC helpers ----------------------------
def _laplace_chunk_sum(u, loc, scale):
    """Sum over a sample chunk of (log q - log p) minus the log-scale constant.

    x = loc + scale*sign(u)*e with e = -log(1-2|u|) is a Laplace(loc, scale)
    sample and |x-loc|/scale == e analytically, so the per-sample integrand is
    |x - p_loc|/p_scale - e   (the -log(scale/p_scale) term is added once per
    (batch, pixel) outside the chunk loop)."""
    a = jnp.minimum(jnp.abs(u), 0.5 - 1e-6)       # avoid log(0) at the tail
    e = -jnp.log(1.0 - 2.0 * a)                   # EUP log; >= 0
    sgn = jnp.where(u >= 0.0, 1.0, -1.0)
    x = loc + scale * sgn * e
    d = jnp.abs(x - PRIOR_P_LOC) * (1.0 / PRIOR_P_SCALE) - e
    s = jnp.sum(d, axis=2, keepdims=True)
    return jnp.sum(s, axis=1, keepdims=True)      # (B_blk, 1, 1)


# ------------------------------ fused loss kernel ----------------------------
def _fused_kernel(rate_ref, counts_ref, mask_ref, u_ref,
                  qp_loc_ref, qp_scale_ref, qp3_ref, out_ref,
                  *, mc_samples, kl_p_norm, compute_recon):
    # ---- Poisson NLL hot path (lgamma(counts+1) term is pre-reduced in glue) --
    r = rate_ref[...]                               # (Bb, S_rate, P)
    c = counts_ref[...]                             # (Bb, 1, P)
    m = mask_ref[...]                               # (Bb, 1, P)
    re = r + EPS
    ll = c * jnp.log(re) - re                       # (Bb, S_rate, P)
    ll_mean = jnp.mean(ll, axis=1, keepdims=True)   # (Bb, 1, P)
    nll_b = -jnp.sum(ll_mean * m, axis=2, keepdims=True)        # (Bb, 1, 1)

    # ---- recon path: dead when RECON_SCALE == 0.0 -> gated at trace time ----
    if compute_recon:
        mean_rate = jnp.mean(r, axis=1, keepdims=True)
        recon_b = jnp.sum(jnp.abs(mean_rate - c) / (c + EPS),
                          axis=2, keepdims=True)                 # (Bb, 1, 1)

    # ---- MC KL(q_p || p_p): flat (S_mc, 1323) layout, chunked over samples ----
    loc = qp_loc_ref[...]                           # (Bb, 1, P)
    scale = qp_scale_ref[...]                       # (Bb, 1, P)
    bb = loc.shape[0]
    d_sum = jnp.zeros((bb, 1, 1), jnp.float32)
    for s0 in range(0, mc_samples, MC_CHUNK):       # static chunk slices
        sz = min(MC_CHUNK, mc_samples - s0)
        u = u_ref[:, s0:s0 + sz, :]                 # (Bb, sz, P)
        d_sum = d_sum + _laplace_chunk_sum(u, loc, scale)
    log_scale_sum = jnp.sum(jnp.log(scale * (1.0 / PRIOR_P_SCALE)),
                            axis=2, keepdims=True)  # (Bb, 1, 1)
    kl_b = (d_sum - float(mc_samples) * log_scale_sum) * kl_p_norm

    # ---- 3D total variation of q_p.mean, (Bb, 3, 441) layout, flat = h*21+w ----
    v = qp3_ref[...]                                # (Bb, 3, 441)
    dd = jnp.sum(jnp.sum(jnp.abs(v[:, 1:_D, :] - v[:, 0:_D - 1, :]),
                         axis=2, keepdims=True), axis=1, keepdims=True)
    dh = jnp.sum(jnp.sum(jnp.abs(v[:, :, _W:_HW] - v[:, :, 0:_HW - _W]),
                         axis=2, keepdims=True), axis=1, keepdims=True)
    wdiff = jnp.abs(v[:, :, 1:_HW] - v[:, :, 0:_HW - 1])        # (Bb, 3, 440)
    col = jax.lax.broadcasted_iota(jnp.int32, wdiff.shape, 2).astype(jnp.float32)
    # robust float "col mod 21" (bias keeps floor() exact); exclude w == 20 pairs
    colmod = col - float(_W) * jnp.floor((col + 0.5) * (1.0 / float(_W)))
    dw = jnp.sum(jnp.sum(jnp.where(colmod < float(_W) - 1.5, wdiff, 0.0),
                         axis=2, keepdims=True), axis=1, keepdims=True)
    tv_b = dd + dh + dw                             # (Bb, 1, 1)

    # ---- pack per-batch partials into one lane-dense (Bb, 1, 128) store ----
    lane = jax.lax.broadcasted_iota(jnp.int32, out_ref.shape, 2)
    tile = jnp.where(lane == _LANE_NLL, nll_b, 0.0)
    tile = jnp.where(lane == _LANE_KL, kl_b, tile)
    tile = jnp.where(lane == _LANE_TV, tv_b, tile)
    if compute_recon:
        tile = jnp.where(lane == _LANE_RECON, recon_b, tile)
    out_ref[...] = tile.astype(jnp.float32)


def _pick_block_b(B):
    """Largest batch block that divides B while keeping >=2 grid steps
    (amortizes per-step overhead; keeps the 'parallel' axis useful on v7x)."""
    for cand in (8, 4, 2):
        if B % cand == 0 and B // cand >= 2:
            return cand
    return 1


def _fused_pallas_call(B, S_rate, mc_samples, compute_recon):
    bb = _pick_block_b(B)
    kernel = functools.partial(
        _fused_kernel,
        mc_samples=mc_samples,
        kl_p_norm=1.0 / (mc_samples * B * _P),
        compute_recon=compute_recon,
    )
    bmap = lambda b: (b, 0, 0)
    return pl.pallas_call(
        kernel,
        out_shape=jax.ShapeDtypeStruct((B, 1, 128), jnp.float32),
        grid_spec=pltpu.PrefetchScalarGridSpec(
            num_scalar_prefetch=0,
            grid=(B // bb,),
            in_specs=[
                pl.BlockSpec((bb, S_rate, _P), bmap),        # rate
                pl.BlockSpec((bb, 1, _P), bmap),             # counts
                pl.BlockSpec((bb, 1, _P), bmap),             # dead-pixel mask
                pl.BlockSpec((bb, mc_samples, _P), bmap),    # uniforms for q_p MC
                pl.BlockSpec((bb, 1, _P), bmap),             # q_p loc   (flat)
                pl.BlockSpec((bb, 1, _P), bmap),             # q_p scale (flat)
                pl.BlockSpec((bb, _D, _HW), bmap),           # q_p loc (3, 441) for TV
            ],
            out_specs=pl.BlockSpec((bb, 1, 128), bmap),
        ),
        compiler_params=pltpu.CompilerParams(
            dimension_semantics=("parallel",),   # shards grid steps across v7x TCs
            vmem_limit_bytes=4 * 1024 * 1024,    # right-sized (~0.6 MB actual)
        ),
    )


# ------------------------------- forward glue --------------------------------
@jax.jit
def laplace_loss_forward(rate, counts, dead_pixel_mask,
                         qp_loc, qp_scale, qI_loc, qI_scale,
                         qbg_loc, qbg_scale, key):
    B, S_rate, P = rate.shape
    assert P == _P
    counts = counts.astype(jnp.float32)
    mask = jnp.squeeze(dead_pixel_mask, axis=-1).astype(jnp.float32)   # (B, P)

    counts3 = counts.reshape(B, 1, P)
    mask3 = mask.reshape(B, 1, P)
    qp_loc_flat = qp_loc.reshape(B, 1, P)       # sublane/lane-dense MC layout
    qp_scale_flat = qp_scale.reshape(B, 1, P)
    qp_loc_3d = qp_loc.reshape(B, _D, _HW)      # TV layout

    # MC uniforms drawn here (no in-kernel HW PRNG: not interpret-portable and
    # the review's seed-correlation concern goes away with jax.random streams).
    kp, ki = jax.random.split(key)
    u_p = jax.random.uniform(kp, (B, MC_SAMPLES, P), jnp.float32, -0.5, 0.5)
    u_i = jax.random.uniform(ki, (MC_SAMPLES, B), jnp.float32, -0.5, 0.5)

    compute_recon = (RECON_SCALE != 0.0)
    parts = _fused_pallas_call(B, S_rate, MC_SAMPLES, compute_recon)(
        rate, counts3, mask3, u_p, qp_loc_flat, qp_scale_flat, qp_loc_3d)

    nll_part = parts[:, 0, _LANE_NLL]                         # (B,)
    kl_p = jnp.sum(parts[:, 0, _LANE_KL])                     # scalar
    tv_loss = jnp.sum(parts[:, 0, _LANE_TV]) * TV_LOSS_SCALE  # scalar

    # lgamma(counts+1) contribution (S-invariant -> pre-reduced here in XLA)
    lgam = jax.lax.lgamma(counts + 1.0)
    neg_ll_sum = nll_part + jnp.sum(lgam * mask, axis=-1)

    # analytic KL(q_bg || p_bg) for Laplace||Laplace (torch registered formula)
    sr = qbg_scale / PRIOR_BG_SCALE
    ad = jnp.abs(qbg_loc - PRIOR_BG_LOC)
    kl_bg = -jnp.log(sr) + ad / PRIOR_BG_SCALE + sr * jnp.exp(-ad / qbg_scale) - 1.0

    # MC KL(q_I || p_I): only B*S scalars -> computed in the XLA glue fusion
    a_i = jnp.minimum(jnp.abs(u_i), 0.5 - 1e-6)
    e_i = -jnp.log(1.0 - 2.0 * a_i)
    x_i = qI_loc[None, :] + qI_scale[None, :] * jnp.where(u_i >= 0.0, 1.0, -1.0) * e_i
    kl_i = jnp.mean(jnp.abs(x_i - PRIOR_I_LOC) / PRIOR_I_SCALE - e_i
                    - jnp.log(qI_scale[None, :] / PRIOR_I_SCALE))

    kl = kl_p + jnp.mean(kl_bg) * P_BG_SCALE_W + kl_i

    if compute_recon:
        recon_loss = (jnp.sum(parts[:, 0, _LANE_RECON]) / (B * P)) * RECON_SCALE
    else:
        recon_loss = jnp.float32(0.0)

    total_loss = neg_ll_sum + kl + recon_loss + tv_loss        # (B,)
    return total_loss, neg_ll_sum, kl, recon_loss


# ----------------------------------- main ------------------------------------
if __name__ == "__main__":
    B, S_RATE = 2, 4

    key = jax.random.PRNGKey(0)
    (k_rate, k_cnt, k_mask, k_qp, k_qps, k_qi, k_qis,
     k_bg, k_bgs, k_mc) = jax.random.split(key, 10)

    rate = jax.random.uniform(k_rate, (B, S_RATE, _P), jnp.float32, 0.1, 5.0)
    counts = jax.random.poisson(k_cnt, 3.0, (B, _P)).astype(jnp.float32)
    dead_pixel_mask = (jax.random.uniform(k_mask, (B, _P, 1)) > 0.05).astype(jnp.float32)

    qp_loc = jax.random.uniform(k_qp, (B, _P), jnp.float32, -1.0, 1.0)
    qp_scale = jax.random.uniform(k_qps, (B, _P), jnp.float32, 0.5, 1.5)
    qI_loc = jax.random.uniform(k_qi, (B,), jnp.float32, -1.0, 1.0)
    qI_scale = jax.random.uniform(k_qis, (B,), jnp.float32, 0.5, 1.5)
    qbg_loc = jax.random.uniform(k_bg, (B,), jnp.float32, -1.0, 1.0)
    qbg_scale = jax.random.uniform(k_bgs, (B,), jnp.float32, 0.5, 1.5)

    total_loss, neg_ll_sum, kl, recon_loss = laplace_loss_forward(
        rate, counts, dead_pixel_mask,
        qp_loc, qp_scale, qI_loc, qI_scale, qbg_loc, qbg_scale, k_mc)

    jax.block_until_ready((total_loss, neg_ll_sum, kl, recon_loss))
    ok = bool(jnp.isfinite(total_loss).all() & jnp.isfinite(neg_ll_sum).all()
              & jnp.isfinite(kl) & jnp.isfinite(recon_loss))
    if not ok:
        raise RuntimeError("non-finite loss output")
    print("KERNEL_OK")
</pallas_src>

<mosaic_0001>
module attributes {stable_mosaic.version = 11 : i64} {
  func.func @_fused_kernel(%arg0: i32, %arg1: memref<1x4x1323xf32, #tpu.memory_space<vmem>>, %arg2: memref<1x1x1323xf32, #tpu.memory_space<vmem>>, %arg3: memref<1x1x1323xf32, #tpu.memory_space<vmem>>, %arg4: memref<1x8x1323xf32, #tpu.memory_space<vmem>>, %arg5: memref<1x1x1323xf32, #tpu.memory_space<vmem>>, %arg6: memref<1x1x1323xf32, #tpu.memory_space<vmem>>, %arg7: memref<1x3x441xf32, #tpu.memory_space<vmem>>, %arg8: memref<1x1x128xf32, #tpu.memory_space<vmem>>) attributes {dimension_semantics = [#tpu.dimension_semantics<parallel>], iteration_bounds = array<i64: 2>, scalar_prefetch = 0 : i64, scratch_operands = 0 : i64, tpu.core_type = #tpu.core_type<tc>, window_params = [{transform_indices = @transform_0, window_bounds = array<i64: 1, 4, 1323>}, {transform_indices = @transform_1, window_bounds = array<i64: 1, 1, 1323>}, {transform_indices = @transform_2, window_bounds = array<i64: 1, 1, 1323>}, {transform_indices = @transform_3, window_bounds = array<i64: 1, 8, 1323>}, {transform_indices = @transform_4, window_bounds = array<i64: 1, 1, 1323>}, {transform_indices = @transform_5, window_bounds = array<i64: 1, 1, 1323>}, {transform_indices = @transform_6, window_bounds = array<i64: 1, 3, 441>}, {transform_indices = @transform_7, window_bounds = array<i64: 1, 1, 128>}]} {
    %c0 = arith.constant 0 : index
    %c0_0 = arith.constant 0 : index
    %c0_1 = arith.constant 0 : index
    %0 = vector.load %arg1[%c0, %c0_0, %c0_1] : memref<1x4x1323xf32, #tpu.memory_space<vmem>>, vector<1x4x1323xf32>
    %c0_2 = arith.constant 0 : index
    %c0_3 = arith.constant 0 : index
    %c0_4 = arith.constant 0 : index
    %1 = vector.load %arg2[%c0_2, %c0_3, %c0_4] : memref<1x1x1323xf32, #tpu.memory_space<vmem>>, vector<1x1x1323xf32>
    %c0_5 = arith.constant 0 : index
    %c0_6 = arith.constant 0 : index
    %c0_7 = arith.constant 0 : index
    %2 = vector.load %arg3[%c0_5, %c0_6, %c0_7] : memref<1x1x1323xf32, #tpu.memory_space<vmem>>, vector<1x1x1323xf32>
    %cst = arith.constant 9.99999974E-6 : f32
    %3 = vector.broadcast %cst : f32 to vector<1x4x1323xf32>
    %4 = arith.addf %0, %3 : vector<1x4x1323xf32>
    %5 = math.log %4 : vector<1x4x1323xf32>
    %6 = vector.broadcast %1 : vector<1x1x1323xf32> to vector<1x4x1323xf32>
    %7 = arith.mulf %6, %5 : vector<1x4x1323xf32>
    %8 = arith.subf %7, %4 : vector<1x4x1323xf32>
    %cst_8 = arith.constant dense<0.000000e+00> : vector<1x1323xf32>
    %9 = vector.multi_reduction <add>, %8, %cst_8 [1] : vector<1x4x1323xf32> to vector<1x1323xf32>
    %10 = vector.shape_cast %9 : vector<1x1323xf32> to vector<1x1x1323xf32>
    %cst_9 = arith.constant 4.000000e+00 : f32
    %11 = vector.broadcast %cst_9 : f32 to vector<1x1x1323xf32>
    %12 = arith.divf %10, %11 : vector<1x1x1323xf32>
    %13 = arith.mulf %12, %2 : vector<1x1x1323xf32>
    %cst_10 = arith.constant dense<0.000000e+00> : vector<1x1xf32>
    %14 = vector.multi_reduction <add>, %13, %cst_10 [2] : vector<1x1x1323xf32> to vector<1x1xf32>
    %15 = vector.shape_cast %14 : vector<1x1xf32> to vector<1x1x1xf32>
    %cst_11 = arith.constant 0.000000e+00 : f32
    %16 = vector.broadcast %cst_11 : f32 to vector<1x1x1xf32>
    %17 = arith.subf %16, %15 : vector<1x1x1xf32>
    %c0_12 = arith.constant 0 : index
    %c0_13 = arith.constant 0 : index
    %c0_14 = arith.constant 0 : index
    %18 = vector.load %arg5[%c0_12, %c0_13, %c0_14] : memref<1x1x1323xf32, #tpu.memory_space<vmem>>, vector<1x1x1323xf32>
    %c0_15 = arith.constant 0 : index
    %c0_16 = arith.constant 0 : index
    %c0_17 = arith.constant 0 : index
    %19 = vector.load %arg6[%c0_15, %c0_16, %c0_17] : memref<1x1x1323xf32, #tpu.memory_space<vmem>>, vector<1x1x1323xf32>
    %cst_18 = arith.constant 0.000000e+00 : f32
    %20 = vector.broadcast %cst_18 : f32 to vector<1x1x1xf32>
    %c0_19 = arith.constant 0 : index
    %c0_20 = arith.constant 0 : index
    %c0_21 = arith.constant 0 : index
    %21 = vector.load %arg4[%c0_19, %c0_20, %c0_21] : memref<1x8x1323xf32, #tpu.memory_space<vmem>>, vector<1x8x1323xf32>
    %22 = math.absf %21 : vector<1x8x1323xf32>
    %cst_22 = arith.constant 4.999990e-01 : f32
    %23 = vector.broadcast %cst_22 : f32 to vector<1x8x1323xf32>
    %24 = arith.minimumf %22, %23 : vector<1x8x1323xf32>
    %cst_23 = arith.constant 2.000000e+00 : f32
    %25 = vector.broadcast %cst_23 : f32 to vector<1x8x1323xf32>
    %26 = arith.mulf %25, %24 : vector<1x8x1323xf32>
    %cst_24 = arith.constant 1.000000e+00 : f32
    %27 = vector.broadcast %cst_24 : f32 to vector<1x8x1323xf32>
    %28 = arith.subf %27, %26 : vector<1x8x1323xf32>
    %29 = math.log %28 : vector<1x8x1323xf32>
    %cst_25 = arith.constant 0.000000e+00 : f32
    %30 = vector.broadcast %cst_25 : f32 to vector<1x8x1323xf32>
    %31 = arith.subf %30, %29 : vector<1x8x1323xf32>
    %cst_26 = arith.constant 0.000000e+00 : f32
    %32 = vector.broadcast %cst_26 : f32 to vector<1x8x1323xf32>
    %33 = arith.cmpf oge, %21, %32 : vector<1x8x1323xf32>
    %cst_27 = arith.constant 1.000000e+00 : f32
    %cst_28 = arith.constant -1.000000e+00 : f32
    %34 = vector.broadcast %cst_27 : f32 to vector<1x8x1323xf32>
    %35 = vector.broadcast %cst_28 : f32 to vector<1x8x1323xf32>
    %36 = arith.select %33, %34, %35 : vector<1x8x1323xi1>, vector<1x8x1323xf32>
    %37 = vector.broadcast %19 : vector<1x1x1323xf32> to vector<1x8x1323xf32>
    %38 = arith.mulf %37, %36 : vector<1x8x1323xf32>
    %39 = arith.mulf %38, %31 : vector<1x8x1323xf32>
    %40 = vector.broadcast %18 : vector<1x1x1323xf32> to vector<1x8x1323xf32>
    %41 = arith.addf %40, %39 : vector<1x8x1323xf32>
    %cst_29 = arith.constant 0.000000e+00 : f32
    %42 = vector.broadcast %cst_29 : f32 to vector<1x8x1323xf32>
    %43 = arith.subf %41, %42 : vector<1x8x1323xf32>
    %44 = math.absf %43 : vector<1x8x1323xf32>
    %cst_30 = arith.constant 1.000000e+00 : f32
    %45 = vector.broadcast %cst_30 : f32 to vector<1x8x1323xf32>
    %46 = arith.mulf %44, %45 : vector<1x8x1323xf32>
    %47 = arith.subf %46, %31 : vector<1x8x1323xf32>
    %cst_31 = arith.constant dense<0.000000e+00> : vector<1x8xf32>
    %48 = vector.multi_reduction <add>, %47, %cst_31 [2] : vector<1x8x1323xf32> to vector<1x8xf32>
    %49 = vector.shape_cast %48 : vector<1x8xf32> to vector<1x8x1xf32>
    %cst_32 = arith.constant dense<0.000000e+00> : vector<1x1xf32>
    %50 = vector.multi_reduction <add>, %49, %cst_32 [1] : vector<1x8x1xf32> to vector<1x1xf32>
    %51 = vector.shape_cast %50 : vector<1x1xf32> to vector<1x1x1xf32>
    %52 = arith.addf %20, %51 : vector<1x1x1xf32>
    %cst_33 = arith.constant 1.000000e+00 : f32
    %53 = vector.broadcast %cst_33 : f32 to vector<1x1x1323xf32>
    %54 = arith.mulf %19, %53 : vector<1x1x1323xf32>
    %55 = math.log %54 : vector<1x1x1323xf32>
    %cst_34 = arith.constant dense<0.000000e+00> : vector<1x1xf32>
    %56 = vector.multi_reduction <add>, %55, %cst_34 [2] : vector<1x1x1323xf32> to vector<1x1xf32>
    %57 = vector.shape_cast %56 : vector<1x1xf32> to vector<1x1x1xf32>
    %cst_35 = arith.constant 8.000000e+00 : f32
    %58 = vector.broadcast %cst_35 : f32 to vector<1x1x1xf32>
    %59 = arith.mulf %58, %57 : vector<1x1x1xf32>
    %60 = arith.subf %52, %59 : vector<1x1x1xf32>
    %cst_36 = arith.constant 4.72411193E-5 : f32
    %61 = vector.broadcast %cst_36 : f32 to vector<1x1x1xf32>
    %62 = arith.mulf %60, %61 : vector<1x1x1xf32>
    %c0_37 = arith.constant 0 : index
    %c0_38 = arith.constant 0 : index
    %c0_39 = arith.constant 0 : index
    %63 = vector.load %arg7[%c0_37, %c0_38, %c0_39] : memref<1x3x441xf32, #tpu.memory_space<vmem>>, vector<1x3x441xf32>
    %64 = vector.extract_strided_slice %63 {offsets = [0, 1, 0], sizes = [1, 2, 441], strides = [1, 1, 1]} : vector<1x3x441xf32> to vector<1x2x441xf32>
    %65 = vector.extract_strided_slice %63 {offsets = [0, 0, 0], sizes = [1, 2, 441], strides = [1, 1, 1]} : vector<1x3x441xf32> to vector<1x2x441xf32>
    %66 = arith.subf %64, %65 : vector<1x2x441xf32>
    %67 = math.absf %66 : vector<1x2x441xf32>
    %cst_40 = arith.constant dense<0.000000e+00> : vector<1x2xf32>
    %68 = vector.multi_reduction <add>, %67, %cst_40 [2] : vector<1x2x441xf32> to vector<1x2xf32>
    %69 = vector.shape_cast %68 : vector<1x2xf32> to vector<1x2x1xf32>
    %cst_41 = arith.constant dense<0.000000e+00> : vector<1x1xf32>
    %70 = vector.multi_reduction <add>, %69, %cst_41 [1] : vector<1x2x1xf32> to vector<1x1xf32>
    %71 = vector.shape_cast %70 : vector<1x1xf32> to vector<1x1x1xf32>
    %72 = vector.extract_strided_slice %63 {offsets = [0, 0, 21], sizes = [1, 3, 420], strides = [1, 1, 1]} : vector<1x3x441xf32> to vector<1x3x420xf32>
    %73 = vector.extract_strided_slice %63 {offsets = [0, 0, 0], sizes = [1, 3, 420], strides = [1, 1, 1]} : vector<1x3x441xf32> to vector<1x3x420xf32>
    %74 = arith.subf %72, %73 : vector<1x3x420xf32>
    %75 = math.absf %74 : vector<1x3x420xf32>
    %cst_42 = arith.constant dense<0.000000e+00> : vector<1x3xf32>
    %76 = vector.multi_reduction <add>, %75, %cst_42 [2] : vector<1x3x420xf32> to vector<1x3xf32>
    %77 = vector.shape_cast %76 : vector<1x3xf32> to vector<1x3x1xf32>
    %cst_43 = arith.constant dense<0.000000e+00> : vector<1x1xf32>
    %78 = vector.multi_reduction <add>, %77, %cst_43 [1] : vector<1x3x1xf32> to vector<1x1xf32>
    %79 = vector.shape_cast %78 : vector<1x1xf32> to vector<1x1x1xf32>
    %80 = vector.extract_strided_slice %63 {offsets = [0, 0, 1], sizes = [1, 3, 440], strides = [1, 1, 1]} : vector<1x3x441xf32> to vector<1x3x440xf32>
    %81 = vector.extract_strided_slice %63 {offsets = [0, 0, 0], sizes = [1, 3, 440], strides = [1, 1, 1]} : vector<1x3x441xf32> to vector<1x3x440xf32>
    %82 = arith.subf %80, %81 : vector<1x3x440xf32>
    %83 = math.absf %82 : vector<1x3x440xf32>
    %84 = tpu.iota {dimensions = array<i32: 2>} : vector<1x3x440xi32>
    %85 = arith.sitofp %84 : vector<1x3x440xi32> to vector<1x3x440xf32>
    %cst_44 = arith.constant 5.000000e-01 : f32
    %86 = vector.broadcast %cst_44 : f32 to vector<1x3x440xf32>
    %87 = arith.addf %85, %86 : vector<1x3x440xf32>
    %cst_45 = arith.constant 0.0476190485 : f32
    %88 = vector.broadcast %cst_45 : f32 to vector<1x3x440xf32>
    %89 = arith.mulf %87, %88 : vector<1x3x440xf32>
    %90 = math.floor %89 : vector<1x3x440xf32>
    %cst_46 = arith.constant 2.100000e+01 : f32
    %91 = vector.broadcast %cst_46 : f32 to vector<1x3x440xf32>
    %92 = arith.mulf %91, %90 : vector<1x3x440xf32>
    %93 = arith.subf %85, %92 : vector<1x3x440xf32>
    %cst_47 = arith.constant 1.950000e+01 : f32
    %94 = vector.broadcast %cst_47 : f32 to vector<1x3x440xf32>
    %95 = arith.cmpf olt, %93, %94 : vector<1x3x440xf32>
    %cst_48 = arith.constant 0.000000e+00 : f32
    %96 = vector.broadcast %cst_48 : f32 to vector<1x3x440xf32>
    %97 = arith.select %95, %83, %96 : vector<1x3x440xi1>, vector<1x3x440xf32>
    %cst_49 = arith.constant dense<0.000000e+00> : vector<1x3xf32>
    %98 = vector.multi_reduction <add>, %97, %cst_49 [2] : vector<1x3x440xf32> to vector<1x3xf32>
    %99 = vector.shape_cast %98 : vector<1x3xf32> to vector<1x3x1xf32>
    %cst_50 = arith.constant dense<0.000000e+00> : vector<1x1xf32>
    %100 = vector.multi_reduction <add>, %99, %cst_50 [1] : vector<1x3x1xf32> to vector<1x1xf32>
    %101 = vector.shape_cast %100 : vector<1x1xf32> to vector<1x1x1xf32>
    %102 = arith.addf %71, %79 : vector<1x1x1xf32>
    %103 = arith.addf %102, %101 : vector<1x1x1xf32>
    %104 = tpu.iota {dimensions = array<i32: 2>} : vector<1x1x128xi32>
    %c0_i32 = arith.constant 0 : i32
    %105 = vector.broadcast %c0_i32 : i32 to vector<1x1x128xi32>
    %106 = arith.cmpi eq, %104, %105 : vector<1x1x128xi32>
    %cst_51 = arith.constant 0.000000e+00 : f32
    %107 = vector.shape_cast %17 : vector<1x1x1xf32> to vector<1x1x1xf32>
    %108 = vector.broadcast %107 : vector<1x1x1xf32> to vector<1x1x128xf32>
    %109 = vector.broadcast %cst_51 : f32 to vector<1x1x128xf32>
    %110 = arith.select %106, %108, %109 : vector<1x1x128xi1>, vector<1x1x128xf32>
    %c1_i32 = arith.constant 1 : i32
    %111 = vector.broadcast %c1_i32 : i32 to vector<1x1x128xi32>
    %112 = arith.cmpi eq, %104, %111 : vector<1x1x128xi32>
    %113 = vector.shape_cast %62 : vector<1x1x1xf32> to vector<1x1x1xf32>
    %114 = vector.broadcast %113 : vector<1x1x1xf32> to vector<1x1x128xf32>
    %115 = arith.select %112, %114, %110 : vector<1x1x128xi1>, vector<1x1x128xf32>
    %c2_i32 = arith.constant 2 : i32
    %116 = vector.broadcast %c2_i32 : i32 to vector<1x1x128xi32>
    %117 = arith.cmpi eq, %104, %116 : vector<1x1x128xi32>
    %118 = vector.shape_cast %103 : vector<1x1x1xf32> to vector<1x1x1xf32>
    %119 = vector.broadcast %118 : vector<1x1x1xf32> to vector<1x1x128xf32>
    %120 = arith.select %117, %119, %115 : vector<1x1x128xi1>, vector<1x1x128xf32>
    %c0_52 = arith.constant 0 : index
    %c0_53 = arith.constant 0 : index
    %c0_54 = arith.constant 0 : index
    %121 = vector.load %arg8[%c0_52, %c0_53, %c0_54] : memref<1x1x128xf32, #tpu.memory_space<vmem>>, vector<1x1x128xf32>
    tpu.vector_store %arg8[%c0_52, %c0_53, %c0_54], %120 {strides = array<i32>} : memref<1x1x128xf32, #tpu.memory_space<vmem>>, vector<1x1x128xf32>,
    return
  }
  func.func @transform_0(%arg0: i32) -> (i32, i32, i32) {
    %c0_i32 = arith.constant 0 : i32
    %c0_i32_0 = arith.constant 0 : i32
    %c0_i32_1 = arith.constant 0 : i32
    return %arg0, %c0_i32, %c0_i32_0 : i32, i32, i32
  }
  func.func @transform_1(%arg0: i32) -> (i32, i32, i32) {
    %c0_i32 = arith.constant 0 : i32
    %c0_i32_0 = arith.constant 0 : i32
    %c0_i32_1 = arith.constant 0 : i32
    return %arg0, %c0_i32, %c0_i32_0 : i32, i32, i32
  }
  func.func @transform_2(%arg0: i32) -> (i32, i32, i32) {
    %c0_i32 = arith.constant 0 : i32
    %c0_i32_0 = arith.constant 0 : i32
    %c0_i32_1 = arith.constant 0 : i32
    return %arg0, %c0_i32, %c0_i32_0 : i32, i32, i32
  }
  func.func @transform_3(%arg0: i32) -> (i32, i32, i32) {
    %c0_i32 = arith.constant 0 : i32
    %c0_i32_0 = arith.constant 0 : i32
    %c0_i32_1 = arith.constant 0 : i32
    return %arg0, %c0_i32, %c0_i32_0 : i32, i32, i32
  }
  func.func @transform_4(%arg0: i32) -> (i32, i32, i32) {
    %c0_i32 = arith.constant 0 : i32
    %c0_i32_0 = arith.constant 0 : i32
    %c0_i32_1 = arith.constant 0 : i32
    return %arg0, %c0_i32, %c0_i32_0 : i32, i32, i32
  }
  func.func @transform_5(%arg0: i32) -> (i32, i32, i32) {
    %c0_i32 = arith.constant 0 : i32
    %c0_i32_0 = arith.constant 0 : i32
    %c0_i32_1 = arith.constant 0 : i32
    return %arg0, %c0_i32, %c0_i32_0 : i32, i32, i32
  }
  func.func @transform_6(%arg0: i32) -> (i32, i32, i32) {
    %c0_i32 = arith.constant 0 : i32
    %c0_i32_0 = arith.constant 0 : i32
    %c0_i32_1 = arith.constant 0 : i32
    return %arg0, %c0_i32, %c0_i32_0 : i32, i32, i32
  }
  func.func @transform_7(%arg0: i32) -> (i32, i32, i32) {
    %c0_i32 = arith.constant 0 : i32
    %c0_i32_0 = arith.constant 0 : i32
    %c0_i32_1 = arith.constant 0 : i32
    return %arg0, %c0_i32, %c0_i32_0 : i32, i32, i32
  }
}

</mosaic_0001>

<llo_original>
// kernel: laplace_loss_forward.1
$region0: #{laplace_loss_forward.1}
  #allocation0 [shape = 'u32[]', space=smem, size = 0x4, offset = 0x4, fixed_abs, tag = 'smem constant byte address 0x4 - core index']
  #allocation1 [shape = 'u32[144,128]{1,0:T(1,128)}', space=vmem, size = 0x12000, scoped, tag = 'internal scratch']
  %s0 = inlined_call_operand.vmem [shape: f32[2,4,1323], index: 0, kind: input, shape index: {}]
  %s1 = inlined_call_operand.vmem [shape: f32[2,1,1323], index: 1, kind: input, shape index: {}]
  %s2 = inlined_call_operand.vmem [shape: f32[2,1,1323], index: 2, kind: input, shape index: {}]
  %s3 = inlined_call_operand.vmem [shape: f32[2,8,1323], index: 3, kind: input, shape index: {}]
  %s4 = inlined_call_operand.vmem [shape: f32[2,1,1323], index: 4, kind: input, shape index: {}]
  %s5 = inlined_call_operand.vmem [shape: f32[2,1,1323], index: 5, kind: input, shape index: {}]
  %s6 = inlined_call_operand.vmem [shape: f32[2,3,441], index: 6, kind: input, shape index: {}]
  %s7 = inlined_call_operand.vmem [shape: f32[2,1,128], index: 7, kind: output, shape index: {}]
  %s8 = sld [smem:[#allocation0]]
  $region61: #{laplace_loss_forward.1} parent=0
    _
  %s10 = ssub.s32 1, %s8
  %s11 = scalar_select 0, %s10, %s8
  loop: start=0, step=1, limit=4
  $region2: #{laplace_loss_forward.1} parent=0 // loop_pre_header
    _
  $region3: #{laplace_loss_forward.1} parent=0 // loop_header
    %s13 = sphi 0, %s17
    %p14 = scmp.ge.s32.totalorder %s13, 4
    %s23 = sphi 0, %s25
    %s26 = sphi 0, %s23
    %s27 = sphi 0, %s26
    %s43 = sphi 0, %s27
    %s49 = sphi 0, %s51
    %s52 = sphi 0, %s49
    %s53 = sphi 0, %s52
    %s69 = sphi 0, %s53
    %s75 = sphi 0, %s77
    %s78 = sphi 0, %s75
    %s79 = sphi 0, %s78
    %s95 = sphi 0, %s79
    %s101 = sphi 0, %s103
    %s104 = sphi 0, %s101
    %s105 = sphi 0, %s104
    %s121 = sphi 0, %s105
    %s127 = sphi 0, %s129
    %s130 = sphi 0, %s127
    %s131 = sphi 0, %s130
    %s147 = sphi 0, %s131
    %s153 = sphi 0, %s155
    %s156 = sphi 0, %s153
    %s157 = sphi 0, %s156
    %s173 = sphi 0, %s157
    %s179 = sphi 0, %s181
    %s182 = sphi 0, %s179
    %s183 = sphi 0, %s182
    %s199 = sphi 0, %s183
    %s205 = sphi 0, %s207
    %s208 = sphi 0, %s205
    %s209 = sphi 0, %s208
    %s225 = sphi 0, %s209
  $region4: #{laplace_loss_forward.1} parent=0 // loop_header_branch
    %16 = sbr.rel (%p14) target = $region8
  $region5: #{laplace_loss_forward.1} parent=0 // loop_body
    %s18 = ssub.s32 %s13, 1
    %s19 = ssub.s32 %s13, 2
    %s20 = sadd.s32 %s13, 1
    %s21 = ssub.s32 %s13, %s20
    %p22 = scmp.eq.s32.totalorder %s21, 0
    %s24 = sadd.s32 %s23, 1
    %s25 = scalar_select %p22, %s23, %s24
    %p28 = pneg %p22
    %p29 = scmp.eq.s32.totalorder %s13, 1
    %p30 = por %p28, %p29
    %p31 = scmp.ne.s32.totalorder %s23, %s26
    %p32 = scmp.eq.s32.totalorder %s13, 0
    %p33 = por %p31, %p32
    %p34 = scmp.ne.s32.totalorder %s23, %s26
    %p35 = scmp.eq.s32.totalorder %s18, 1
    %p36 = por %p34, %p35
    %p37 = scmp.ne.s32.totalorder %s26, %s27
    %p38 = scmp.eq.s32.totalorder %s18, 0
    %p39 = por %p37, %p38
    %p40 = scmp.ne.s32.totalorder %s26, %s27
    %p41 = scmp.eq.s32.totalorder %s19, 1
    %p42 = por %p40, %p41
    %p44 = scmp.ne.s32.totalorder %s27, %s43
    %p45 = scmp.eq.s32.totalorder %s19, 0
    %p46 = por %p44, %p45
    %s47 = ssub.s32 %s13, %s20
    %p48 = scmp.eq.s32.totalorder %s47, 0
    %s50 = sadd.s32 %s49, 1
    %s51 = scalar_select %p48, %s49, %s50
    %p54 = pneg %p48
    %p55 = scmp.eq.s32.totalorder %s13, 1
    %p56 = por %p54, %p55
    %p57 = scmp.ne.s32.totalorder %s49, %s52
    %p58 = scmp.eq.s32.totalorder %s13, 0
    %p59 = por %p57, %p58
    %p60 = scmp.ne.s32.totalorder %s49, %s52
    %p61 = scmp.eq.s32.totalorder %s18, 1
    %p62 = por %p60, %p61
    %p63 = scmp.ne.s32.totalorder %s52, %s53
    %p64 = scmp.eq.s32.totalorder %s18, 0
    %p65 = por %p63, %p64
    %p66 = scmp.ne.s32.totalorder %s52, %s53
    %p67 = scmp.eq.s32.totalorder %s19, 1
    %p68 = por %p66, %p67
    %p70 = scmp.ne.s32.totalorder %s53, %s69
    %p71 = scmp.eq.s32.totalorder %s19, 0
    %p72 = por %p70, %p71
    %s73 = ssub.s32 %s13, %s20
    %p74 = scmp.eq.s32.totalorder %s73, 0
    %s76 = sadd.s32 %s75, 1
    %s77 = scalar_select %p74, %s75, %s76
    %p80 = pneg %p74
    %p81 = scmp.eq.s32.totalorder %s13, 1
    %p82 = por %p80, %p81
    %p83 = scmp.ne.s32.totalorder %s75, %s78
    %p84 = scmp.eq.s32.totalorder %s13, 0
    %p85 = por %p83, %p84
    %p86 = scmp.ne.s32.totalorder %s75, %s78
    %p87 = scmp.eq.s32.totalorder %s18, 1
    %p88 = por %p86, %p87
    %p89 = scmp.ne.s32.totalorder %s78, %s79
    %p90 = scmp.eq.s32.totalorder %s18, 0
    %p91 = por %p89, %p90
    %p92 = scmp.ne.s32.totalorder %s78, %s79
    %p93 = scmp.eq.s32.totalorder %s19, 1
    %p94 = por %p92, %p93
    %p96 = scmp.ne.s32.totalorder %s79, %s95
    %p97 = scmp.eq.s32.totalorder %s19, 0
    %p98 = por %p96, %p97
    %s99 = ssub.s32 %s13, %s20
    %p100 = scmp.eq.s32.totalorder %s99, 0
    %s102 = sadd.s32 %s101, 1
    %s103 = scalar_select %p100, %s101, %s102
    %p106 = pneg %p100
    %p107 = scmp.eq.s32.totalorder %s13, 1
    %p108 = por %p106, %p107
    %p109 = scmp.ne.s32.totalorder %s101, %s104
    %p110 = scmp.eq.s32.totalorder %s13, 0
    %p111 = por %p109, %p110
    %p112 = scmp.ne.s32.totalorder %s101, %s104
    %p113 = scmp.eq.s32.totalorder %s18, 1
    %p114 = por %p112, %p113
    %p115 = scmp.ne.s32.totalorder %s104, %s105
    %p116 = scmp.eq.s32.totalorder %s18, 0
    %p117 = por %p115, %p116
    %p118 = scmp.ne.s32.totalorder %s104, %s105
    %p119 = scmp.eq.s32.totalorder %s19, 1
    %p120 = por %p118, %p119
    %p122 = scmp.ne.s32.totalorder %s105, %s121
    %p123 = scmp.eq.s32.totalorder %s19, 0
    %p124 = por %p122, %p123
    %s125 = ssub.s32 %s13, %s20
    %p126 = scmp.eq.s32.totalorder %s125, 0
    %s128 = sadd.s32 %s127, 1
    %s129 = scalar_select %p126, %s127, %s128
    %p132 = pneg %p126
    %p133 = scmp.eq.s32.totalorder %s13, 1
    %p134 = por %p132, %p133
    %p135 = scmp.ne.s32.totalorder %s127, %s130
    %p136 = scmp.eq.s32.totalorder %s13, 0
    %p137 = por %p135, %p136
    %p138 = scmp.ne.s32.totalorder %s127, %s130
    %p139 = scmp.eq.s32.totalorder %s18, 1
    %p140 = por %p138, %p139
    %p141 = scmp.ne.s32.totalorder %s130, %s131
    %p142 = scmp.eq.s32.totalorder %s18, 0
    %p143 = por %p141, %p142
    %p144 = scmp.ne.s32.totalorder %s130, %s131
    %p145 = scmp.eq.s32.totalorder %s19, 1
    %p146 = por %p144, %p145
    %p148 = scmp.ne.s32.totalorder %s131, %s147
    %p149 = scmp.eq.s32.totalorder %s19, 0
    %p150 = por %p148, %p149
    %s151 = ssub.s32 %s13, %s20
    %p152 = scmp.eq.s32.totalorder %s151, 0
    %s154 = sadd.s32 %s153, 1
    %s155 = scalar_select %p152, %s153, %s154
    %p158 = pneg %p152
    %p159 = scmp.eq.s32.totalorder %s13, 1
    %p160 = por %p158, %p159
    %p161 = scmp.ne.s32.totalorder %s153, %s156
    %p162 = scmp.eq.s32.totalorder %s13, 0
    %p163 = por %p161, %p162
    %p164 = scmp.ne.s32.totalorder %s153, %s156
    %p165 = scmp.eq.s32.totalorder %s18, 1
    %p166 = por %p164, %p165
    %p167 = scmp.ne.s32.totalorder %s156, %s157
    %p168 = scmp.eq.s32.totalorder %s18, 0
    %p169 = por %p167, %p168
    %p170 = scmp.ne.s32.totalorder %s156, %s157
    %p171 = scmp.eq.s32.totalorder %s19, 1
    %p172 = por %p170, %p171
    %p174 = scmp.ne.s32.totalorder %s157, %s173
    %p175 = scmp.eq.s32.totalorder %s19, 0
    %p176 = por %p174, %p175
    %s177 = ssub.s32 %s13, %s20
    %p178 = scmp.eq.s32.totalorder %s177, 0
    %s180 = sadd.s32 %s179, 1
    %s181 = scalar_select %p178, %s179, %s180
    %p184 = pneg %p178
    %p185 = scmp.eq.s32.totalorder %s13, 1
    %p186 = por %p184, %p185
    %p187 = scmp.ne.s32.totalorder %s179, %s182
    %p188 = scmp.eq.s32.totalorder %s13, 0
    %p189 = por %p187, %p188
    %p190 = scmp.ne.s32.totalorder %s179, %s182
    %p191 = scmp.eq.s32.totalorder %s18, 1
    %p192 = por %p190, %p191
    %p193 = scmp.ne.s32.totalorder %s182, %s183
    %p194 = scmp.eq.s32.totalorder %s18, 0
    %p195 = por %p193, %p194
    %p196 = scmp.ne.s32.totalorder %s182, %s183
    %p197 = scmp.eq.s32.totalorder %s19, 1
    %p198 = por %p196, %p197
    %p200 = scmp.ne.s32.totalorder %s183, %s199
    %p201 = scmp.eq.s32.totalorder %s19, 0
    %p202 = por %p200, %p201
    %s203 = ssub.s32 %s13, %s20
    %p204 = scmp.eq.s32.totalorder %s203, 0
    %s206 = sadd.s32 %s205, 1
    %s207 = scalar_select %p204, %s205, %s206
    %p210 = pneg %p204
    %p211 = scmp.eq.s32.totalorder %s13, 1
    %p212 = por %p210, %p211
    %p213 = scmp.ne.s32.totalorder %s205, %s208
    %p214 = scmp.eq.s32.totalorder %s13, 0
    %p215 = por %p213, %p214
    %p216 = scmp.ne.s32.totalorder %s205, %s208
    %p217 = scmp.eq.s32.totalorder %s18, 1
    %p218 = por %p216, %p217
    %p219 = scmp.ne.s32.totalorder %s208, %s209
    %p220 = scmp.eq.s32.totalorder %s18, 0
    %p221 = por %p219, %p220
    %p222 = scmp.ne.s32.totalorder %s208, %s209
    %p223 = scmp.eq.s32.totalorder %s19, 1
    %p224 = por %p222, %p223
    %p226 = scmp.ne.s32.totalorder %s209, %s225
    %p227 = scmp.eq.s32.totalorder %s19, 0
    %p228 = por %p226, %p227
    %p229 = scmp.le.s32.totalorder 1, %s13
    %p230 = scmp.lt.s32.totalorder %s13, 3
    %p231 = pnand %p229, %p230
    %p232 = pneg %p231
    // Predicated region
    $region9: #{laplace_loss_forward.1} parent=5 // pred_check
      _
    $region10: #{laplace_loss_forward.1} parent=5 // pred_check_branch
      %234 = sbr.rel (%p231) target = $region12
    $region11: #{laplace_loss_forward.1} parent=5 // pred_region
      %s235 = ssub.s32 %s13, 1
    $region12: #{laplace_loss_forward.1} parent=5 // pred_fallthru
      _
    %p236 = scmp.lt.s32.totalorder %s13, 2
    // Predicated region
    $region13: #{laplace_loss_forward.1} parent=5 // pred_check
      %p237 = pneg %p236
    $region14: #{laplace_loss_forward.1} parent=5 // pred_check_branch
      %239 = sbr.rel (%p237) target = $region16
    $region15: #{laplace_loss_forward.1} parent=5 // pred_region
      // Predicated region
      $region17: #{laplace_loss_forward.1} parent=15 // pred_check
        %p240 = pneg %p33
      $region18: #{laplace_loss_forward.1} parent=15 // pred_check_branch
        %242 = sbr.rel (%p240) target = $region20
      $region19: #{laplace_loss_forward.1} parent=15 // pred_region
        %p243 = scmp.lt.s32.totalorder %s13, 1
        %s244 = scalar_select %p243, %s13, 1
        %s245 = smul.addr %s244, 11
        %s246 = smul.addr %s245, 4
        %s247 = scalar_lea.vmem %s0, %s246
      $region20: #{laplace_loss_forward.1} parent=15 // pred_fallthru
        _
      // Predicated region
      $region21: #{laplace_loss_forward.1} parent=15 // pred_check
        %p248 = pneg %p59
      $region22: #{laplace_loss_forward.1} parent=15 // pred_check_branch
        %250 = sbr.rel (%p248) target = $region24
      $region23: #{laplace_loss_forward.1} parent=15 // pred_region
        %p251 = scmp.lt.s32.totalorder %s13, 1
        %s252 = scalar_select %p251, %s13, 1
        %s253 = smul.addr %s252, 11
        %s254 = scalar_lea.vmem %s1, %s253
      $region24: #{laplace_loss_forward.1} parent=15 // pred_fallthru
        _
      // Predicated region
      $region25: #{laplace_loss_forward.1} parent=15 // pred_check
        %p255 = pneg %p85
      $region26: #{laplace_loss_forward.1} parent=15 // pred_check_branch
        %257 = sbr.rel (%p255) target = $region28
      $region27: #{laplace_loss_forward.1} parent=15 // pred_region
        %p258 = scmp.lt.s32.totalorder %s13, 1
        %s259 = scalar_select %p258, %s13, 1
        %s260 = smul.addr %s259, 11
        %s261 = scalar_lea.vmem %s2, %s260
      $region28: #{laplace_loss_forward.1} parent=15 // pred_fallthru
        _
      // Predicated region
      $region29: #{laplace_loss_forward.1} parent=15 // pred_check
        %p262 = pneg %p111
      $region30: #{laplace_loss_forward.1} parent=15 // pred_check_branch
        %264 = sbr.rel (%p262) target = $region32
      $region31: #{laplace_loss_forward.1} parent=15 // pred_region
        %p265 = scmp.lt.s32.totalorder %s13, 1
        %s266 = scalar_select %p265, %s13, 1
        %s267 = smul.addr %s266, 11
        %s268 = smul.addr %s267, 8
        %s269 = scalar_lea.vmem %s3, %s268
      $region32: #{laplace_loss_forward.1} parent=15 // pred_fallthru
        _
      // Predicated region
      $region33: #{laplace_loss_forward.1} parent=15 // pred_check
        %p270 = pneg %p137
      $region34: #{laplace_loss_forward.1} parent=15 // pred_check_branch
        %272 = sbr.rel (%p270) target = $region36
      $region35: #{laplace_loss_forward.1} parent=15 // pred_region
        %p273 = scmp.lt.s32.totalorder %s13, 1
        %s274 = scalar_select %p273, %s13, 1
        %s275 = smul.addr %s274, 11
        %s276 = scalar_lea.vmem %s4, %s275
      $region36: #{laplace_loss_forward.1} parent=15 // pred_fallthru
        _
      // Predicated region
      $region37: #{laplace_loss_forward.1} parent=15 // pred_check
        %p277 = pneg %p163
      $region38: #{laplace_loss_forward.1} parent=15 // pred_check_branch
        %279 = sbr.rel (%p277) target = $region40
      $region39: #{laplace_loss_forward.1} parent=15 // pred_region
        %p280 = scmp.lt.s32.totalorder %s13, 1
        %s281 = scalar_select %p280, %s13, 1
        %s282 = smul.addr %s281, 11
        %s283 = scalar_lea.vmem %s5, %s282
      $region40: #{laplace_loss_forward.1} parent=15 // pred_fallthru
        _
      // Predicated region
      $region41: #{laplace_loss_forward.1} parent=15 // pred_check
        %p284 = pneg %p189
      $region42: #{laplace_loss_forward.1} parent=15 // pred_check_branch
        %286 = sbr.rel (%p284) target = $region44
      $region43: #{laplace_loss_forward.1} parent=15 // pred_region
        %p287 = scmp.lt.s32.totalorder %s13, 1
        %s288 = scalar_select %p287, %s13, 1
        %s289 = smul.addr %s288, 4
        %s290 = smul.addr %s289, 4
        %s291 = scalar_lea.vmem %s6, %s290
      $region44: #{laplace_loss_forward.1} parent=15 // pred_fallthru
        _
    $region16: #{laplace_loss_forward.1} parent=5 // pred_fallthru
      _
    %p292 = scmp.le.s32.totalorder 1, %s13
    %p293 = scmp.lt.s32.totalorder %s13, 3
    %p294 = pnand %p292, %p293
    %p295 = pneg %p294
    // Predicated region
    $region45: #{laplace_loss_forward.1} parent=5 // pred_check
      _
    $region46: #{laplace_loss_forward.1} parent=5 // pred_check_branch
      %297 = sbr.rel (%p294) target = $region48
    $region47: #{laplace_loss_forward.1} parent=5 // pred_region
      %s298 = ssub.s32 %s13, 1
      %p299 = scmp.lt.s32.totalorder %s18, 1
      %s300 = scalar_select %p299, %s18, 1
      %s301 = smul.addr %s300, 11
      %s302 = smul.addr %s301, 4
      %s303 = scalar_lea.vmem %s0, %s302
      %p304 = pneg %p39
      %p305 = pneg %p36
      %p306 = scmp.lt.s32.totalorder %s18, 1
      %s307 = scalar_select %p306, %s18, 1
      %s308 = smul.addr %s307, 11
      %s309 = scalar_lea.vmem %s1, %s308
      %p310 = pneg %p65
      %p311 = pneg %p62
      %p312 = scmp.lt.s32.totalorder %s18, 1
      %s313 = scalar_select %p312, %s18, 1
      %s314 = smul.addr %s313, 11
      %s315 = scalar_lea.vmem %s2, %s314
      %p316 = pneg %p91
      %p317 = pneg %p88
      %p318 = scmp.lt.s32.totalorder %s18, 1
      %s319 = scalar_select %p318, %s18, 1
      %s320 = smul.addr %s319, 11
      %s321 = smul.addr %s320, 8
      %s322 = scalar_lea.vmem %s3, %s321
      %p323 = pneg %p117
      %p324 = pneg %p114
      %p325 = scmp.lt.s32.totalorder %s18, 1
      %s326 = scalar_select %p325, %s18, 1
      %s327 = smul.addr %s326, 11
      %s328 = scalar_lea.vmem %s4, %s327
      %p329 = pneg %p143
      %p330 = pneg %p140
      %p331 = scmp.lt.s32.totalorder %s18, 1
      %s332 = scalar_select %p331, %s18, 1
      %s333 = smul.addr %s332, 11
      %s334 = scalar_lea.vmem %s5, %s333
      %p335 = pneg %p169
      %p336 = pneg %p166
      %p337 = scmp.lt.s32.totalorder %s18, 1
      %s338 = scalar_select %p337, %s18, 1
      %s339 = smul.addr %s338, 4
      %s340 = smul.addr %s339, 4
      %s341 = scalar_lea.vmem %s6, %s340
      %p342 = pneg %p195
      %p343 = pneg %p192
      %p344 = pneg %p221
      %p345 = pneg %p218
      %p346 = scmp.lt.s32.totalorder %s18, 1
      %s347 = scalar_select %p346, %s18, 1
      %s348 = scalar_lea.vmem %s7, %s347
      %p349 = scmp.lt.s32.totalorder %s18, 1
      %s350 = scalar_select %p349, %s18, 1
      %s351 = smul.addr %s350, 11
      %s352 = smul.addr %s351, 4
      %s353 = scalar_lea.vmem %s0, %s352
      %p354 = scmp.lt.s32.totalorder %s18, 1
      %s355 = scalar_select %p354, %s18, 1
      %s356 = smul.addr %s355, 11
      %s357 = scalar_lea.vmem %s1, %s356
      %p358 = scmp.lt.s32.totalorder %s18, 1
      %s359 = scalar_select %p358, %s18, 1
      %s360 = smul.addr %s359, 11
      %s361 = scalar_lea.vmem %s2, %s360
      %p362 = scmp.lt.s32.totalorder %s18, 1
      %s363 = scalar_select %p362, %s18, 1
      %s364 = smul.addr %s363, 11
      %s365 = smul.addr %s364, 8
      %s366 = scalar_lea.vmem %s3, %s365
      %p367 = scmp.lt.s32.totalorder %s18, 1
      %s368 = scalar_select %p367, %s18, 1
      %s369 = smul.addr %s368, 11
      %s370 = scalar_lea.vmem %s4, %s369
      %p371 = scmp.lt.s32.totalorder %s18, 1
      %s372 = scalar_select %p371, %s18, 1
      %s373 = smul.addr %s372, 11
      %s374 = scalar_lea.vmem %s5, %s373
      %p375 = scmp.lt.s32.totalorder %s18, 1
      %s376 = scalar_select %p375, %s18, 1
      %s377 = smul.addr %s376, 4
      %s378 = smul.addr %s377, 4
      %s379 = scalar_lea.vmem %s6, %s378
      %p380 = scmp.lt.s32.totalorder %s18, 1
      %s381 = scalar_select %p380, %s18, 1
      %s382 = scalar_lea.vmem %s7, %s381
      %v383 = vld [vmem:[%s353] sm:$0xff]
      %v384 = vld [vmem:[%s353 + $0x8] sm:$0xff]
      %v385 = vld [vmem:[%s353 + $0x10] sm:$0xff]
      %v386 = vld [vmem:[%s353 + $0x18] sm:$0xff]
      %v387 = vld [vmem:[%s353 + $0x20] sm:$0xff]
      %v388 = vld [vmem:[%s353 + $0x28] sm:$0xf]
      %v389 = vld [vmem:[%s357] sm:$0xff]
      %v390 = vld [vmem:[%s357 + $0x8] sm:$0x7]
      %v391 = vld [vmem:[%s361] sm:$0xff]
      %v392 = vld [vmem:[%s361 + $0x8] sm:$0x7]
      %v393 = vadd.f32 %v383, 1e-05
      %v394 = vadd.f32 %v384, 1e-05
      %v395 = vadd.f32 %v385, 1e-05
      %v396 = vadd.f32 %v386, 1e-05
      %v397 = vadd.f32 %v387, 1e-05
      %v398 = vadd.f32 %v388, 1e-05
      %v399 = vlog2.pop %v393
      %v400 = vmul.f32 %v399, 0.6931472
      %v401 = vlog2.pop %v394
      %v402 = vmul.f32 %v401, 0.6931472
      %v403 = vlog2.pop %v395
      %v404 = vmul.f32 %v403, 0.6931472
      %v405 = vlog2.pop %v396
      %v406 = vmul.f32 %v405, 0.6931472
      %v407 = vlog2.pop %v397
      %v408 = vmul.f32 %v407, 0.6931472
      %v409 = vlog2.pop %v398
      %v410 = vmul.f32 %v409, 0.6931472
      %v413 = vlaneseq
      %v414 = vshrl.u32 %v413, 7
      %v415 = vsub.s32 0, %v414
      %v416 = vrot.slane %v389, %v415
      %v417 = vlaneseq
      %v418 = vshrl.u32 %v417, 7
      %v419 = vsub.s32 1, %v418
      %v420 = vrot.slane %v389, %v419
      %v421 = vlaneseq
      %v422 = vshrl.u32 %v421, 7
      %v423 = vsub.s32 2, %v422
      %v424 = vrot.slane %v389, %v423
      %v425 = vlaneseq
      %v426 = vshrl.u32 %v425, 7
      %v427 = vsub.s32 3, %v426
      %v428 = vrot.slane %v389, %v427
      %v429 = vlaneseq
      %v430 = vshrl.u32 %v429, 7
      %v431 = vsub.s32 4, %v430
      %v432 = vrot.slane %v389, %v431
      %v433 = vlaneseq
      %v434 = vshrl.u32 %v433, 7
      %v435 = vsub.s32 5, %v434
      %v436 = vrot.slane %v389, %v435
      %v437 = vlaneseq
      %v438 = vshrl.u32 %v437, 7
      %v439 = vsub.s32 6, %v438
      %v440 = vrot.slane %v389, %v439
      %v441 = vlaneseq
      %v442 = vshrl.u32 %v441, 7
      %v443 = vsub.s32 7, %v442
      %v444 = vrot.slane %v389, %v443
      %v445 = vlaneseq
      %v446 = vshrl.u32 %v445, 7
      %v447 = vsub.s32 0, %v446
      %v448 = vrot.slane %v390, %v447
      %v449 = vlaneseq
      %v450 = vshrl.u32 %v449, 7
      %v451 = vsub.s32 1, %v450
      %v452 = vrot.slane %v390, %v451
      %v453 = vlaneseq
      %v454 = vshrl.u32 %v453, 7
      %v455 = vsub.s32 2, %v454
      %v456 = vrot.slane %v390, %v455
      %v473 = vcombine.high %v400, %v400
      %v474 = vcombine.high %v402, %v402
      %v475 = vcombine.high %v404, %v404
      %v476 = vcombine.high %v406, %v406
      %v477 = vcombine.high %v408, %v408
      %v483 = vmul.f32 %v416, %v400
      %v484 = vmul.f32 %v420, %v473
      %v485 = vmul.f32 %v424, %v402
      %v486 = vmul.f32 %v428, %v474
      %v487 = vmul.f32 %v432, %v404
      %v488 = vmul.f32 %v436, %v475
      %v489 = vmul.f32 %v440, %v406
      %v490 = vmul.f32 %v444, %v476
      %v491 = vmul.f32 %v448, %v408
      %v492 = vmul.f32 %v452, %v477
      %v493 = vmul.f32 %v456, %v410
      %v499 = vcombine.high %v393, %v393
      %v500 = vcombine.high %v394, %v394
      %v501 = vcombine.high %v395, %v395
      %v502 = vcombine.high %v396, %v396
      %v503 = vcombine.high %v397, %v397
      %v509 = vsub.f32 %v483, %v393
      %v510 = vsub.f32 %v484, %v499
      %v511 = vsub.f32 %v485, %v394
      %v512 = vsub.f32 %v486, %v500
      %v513 = vsub.f32 %v487, %v395
      %v514 = vsub.f32 %v488, %v501
      %v515 = vsub.f32 %v489, %v396
      %v516 = vsub.f32 %v490, %v502
      %v517 = vsub.f32 %v491, %v397
      %v518 = vsub.f32 %v492, %v503
      %v519 = vsub.f32 %v493, %v398
      %vm520 = vcmask 1043456
      %v521 = vsel %vm520, %v509, 0.0
      %v522 = vrot.slane %v521, 4
      %v523 = vadd.f32 %v521, %v522
      %v524 = vrot.slane %v523, 2
      %v525 = vadd.f32 %v523, %v524
      %v526 = vrot.slane %v525, 1
      %v527 = vadd.f32 %v525, %v526
      %v528 = vsel %vm520, %v510, 0.0
      %v529 = vrot.slane %v528, 4
      %v530 = vadd.f32 %v528, %v529
      %v531 = vrot.slane %v530, 2
      %v532 = vadd.f32 %v530, %v531
      %v533 = vrot.slane %v532, 1
      %v534 = vadd.f32 %v532, %v533
      %v535 = vsel %vm520, %v511, 0.0
      %v536 = vrot.slane %v535, 4
      %v537 = vadd.f32 %v535, %v536
      %v538 = vrot.slane %v537, 2
      %v539 = vadd.f32 %v537, %v538
      %v540 = vrot.slane %v539, 1
      %v541 = vadd.f32 %v539, %v540
      %v542 = vsel %vm520, %v512, 0.0
      %v543 = vrot.slane %v542, 4
      %v544 = vadd.f32 %v542, %v543
      %v545 = vrot.slane %v544, 2
      %v546 = vadd.f32 %v544, %v545
      %v547 = vrot.slane %v546, 1
      %v548 = vadd.f32 %v546, %v547
      %v549 = vsel %vm520, %v513, 0.0
      %v550 = vrot.slane %v549, 4
      %v551 = vadd.f32 %v549, %v550
      %v552 = vrot.slane %v551, 2
      %v553 = vadd.f32 %v551, %v552
      %v554 = vrot.slane %v553, 1
      %v555 = vadd.f32 %v553, %v554
      %v556 = vsel %vm520, %v514, 0.0
      %v557 = vrot.slane %v556, 4
      %v558 = vadd.f32 %v556, %v557
      %v559 = vrot.slane %v558, 2
      %v560 = vadd.f32 %v558, %v559
      %v561 = vrot.slane %v560, 1
      %v562 = vadd.f32 %v560, %v561
      %v563 = vsel %vm520, %v515, 0.0
      %v564 = vrot.slane %v563, 4
      %v565 = vadd.f32 %v563, %v564
      %v566 = vrot.slane %v565, 2
      %v567 = vadd.f32 %v565, %v566
      %v568 = vrot.slane %v567, 1
      %v569 = vadd.f32 %v567, %v568
      %v570 = vsel %vm520, %v516, 0.0
      %v571 = vrot.slane %v570, 4
      %v572 = vadd.f32 %v570, %v571
      %v573 = vrot.slane %v572, 2
      %v574 = vadd.f32 %v572, %v573
      %v575 = vrot.slane %v574, 1
      %v576 = vadd.f32 %v574, %v575
      %v577 = vsel %vm520, %v517, 0.0
      %v578 = vrot.slane %v577, 4
      %v579 = vadd.f32 %v577, %v578
      %v580 = vrot.slane %v579, 2
      %v581 = vadd.f32 %v579, %v580
      %v582 = vrot.slane %v581, 1
      %v583 = vadd.f32 %v581, %v582
      %v584 = vsel %vm520, %v518, 0.0
      %v585 = vrot.slane %v584, 4
      %v586 = vadd.f32 %v584, %v585
      %v587 = vrot.slane %v586, 2
      %v588 = vadd.f32 %v586, %v587
      %v589 = vrot.slane %v588, 1
      %v590 = vadd.f32 %v588, %v589
      %vm591 = vcmask 347136
      %v592 = vsel %vm591, %v519, 0.0
      %v593 = vrot.slane %v592, 4
      %v594 = vadd.f32 %v592, %v593
      %v595 = vrot.slane %v594, 2
      %v596 = vadd.f32 %v594, %v595
      %v597 = vrot.slane %v596, 1
      %v598 = vadd.f32 %v596, %v597
      %v599 = vrcp.pop 4.0
      %v600 = vmul.f32 %v527, %v599
      %v601 = vmul.f32 %v534, %v599
      %v602 = vmul.f32 %v541, %v599
      %v603 = vmul.f32 %v548, %v599
      %v604 = vmul.f32 %v555, %v599
      %v605 = vmul.f32 %v562, %v599
      %v606 = vmul.f32 %v569, %v599
      %v607 = vmul.f32 %v576, %v599
      %v608 = vmul.f32 %v583, %v599
      %v609 = vmul.f32 %v590, %v599
      %v610 = vmul.f32 %v598, %v599
      %v613 = vlaneseq
      %v614 = vshrl.u32 %v613, 7
      %v615 = vsub.s32 0, %v614
      %v616 = vrot.slane %v391, %v615
      %v617 = vlaneseq
      %v618 = vshrl.u32 %v617, 7
      %v619 = vsub.s32 1, %v618
      %v620 = vrot.slane %v391, %v619
      %v621 = vlaneseq
      %v622 = vshrl.u32 %v621, 7
      %v623 = vsub.s32 2, %v622
      %v624 = vrot.slane %v391, %v623
      %v625 = vlaneseq
      %v626 = vshrl.u32 %v625, 7
      %v627 = vsub.s32 3, %v626
      %v628 = vrot.slane %v391, %v627
      %v629 = vlaneseq
      %v630 = vshrl.u32 %v629, 7
      %v631 = vsub.s32 4, %v630
      %v632 = vrot.slane %v391, %v631
      %v633 = vlaneseq
      %v634 = vshrl.u32 %v633, 7
      %v635 = vsub.s32 5, %v634
      %v636 = vrot.slane %v391, %v635
      %v637 = vlaneseq
      %v638 = vshrl.u32 %v637, 7
      %v639 = vsub.s32 6, %v638
      %v640 = vrot.slane %v391, %v639
      %v641 = vlaneseq
      %v642 = vshrl.u32 %v641, 7
      %v643 = vsub.s32 7, %v642
      %v644 = vrot.slane %v391, %v643
      %v645 = vlaneseq
      %v646 = vshrl.u32 %v645, 7
      %v647 = vsub.s32 0, %v646
      %v648 = vrot.slane %v392, %v647
      %v649 = vlaneseq
      %v650 = vshrl.u32 %v649, 7
      %v651 = vsub.s32 1, %v650
      %v652 = vrot.slane %v392, %v651
      %v653 = vlaneseq
      %v654 = vshrl.u32 %v653, 7
      %v655 = vsub.s32 2, %v654
      %v656 = vrot.slane %v392, %v655
      %v668 = vmul.f32 %v600, %v616
      %v669 = vmul.f32 %v601, %v620
      %v670 = vmul.f32 %v602, %v624
      %v671 = vmul.f32 %v603, %v628
      %v672 = vmul.f32 %v604, %v632
      %v673 = vmul.f32 %v605, %v636
      %v674 = vmul.f32 %v606, %v640
      %v675 = vmul.f32 %v607, %v644
      %v676 = vmul.f32 %v608, %v648
      %v677 = vmul.f32 %v609, %v652
      %v678 = vmul.f32 %v610, %v656
      %vm679 = vcmask 1040384
      %v680 = vsel %vm679, %v668, 0.0
      %v681 = vsel %vm679, %v669, 0.0
      %v682 = vadd.f32 %v680, %v681
      %v683 = vsel %vm679, %v670, 0.0
      %v684 = vadd.f32 %v682, %v683
      %v685 = vsel %vm679, %v671, 0.0
      %v686 = vadd.f32 %v684, %v685
      %v687 = vsel %vm679, %v672, 0.0
      %v688 = vadd.f32 %v686, %v687
      %v689 = vsel %vm679, %v673, 0.0
      %v690 = vadd.f32 %v688, %v689
      %v691 = vsel %vm679, %v674, 0.0
      %v692 = vadd.f32 %v690, %v691
      %v693 = vsel %vm679, %v675, 0.0
      %v694 = vadd.f32 %v692, %v693
      %v695 = vsel %vm679, %v676, 0.0
      %v696 = vadd.f32 %v694, %v695
      %v697 = vsel %vm679, %v677, 0.0
      %v698 = vadd.f32 %v696, %v697
      %vm699 = vcmask 344064
      %v700 = vsel %vm699, %v678, 0.0
      %v701 = vadd.f32 %v698, %v700
      %702 = vadd.xlane.f32.xlu0 %v701
      %v703 = vpop.xlane.xlu0 %702
      %v704 = vsub.f32 0.0, %v703
      %v705 = vld [vmem:[%s370] sm:$0xff]
      %v706 = vld [vmem:[%s370 + $0x8] sm:$0x7]
      %v707 = vld [vmem:[%s374] sm:$0xff]
      %v708 = vld [vmem:[%s374 + $0x8] sm:$0x7]
      %v709 = vld [vmem:[%s366] sm:$0xff]
      %v710 = vld [vmem:[%s366 + $0x8] sm:$0xff]
      %v711 = vld [vmem:[%s366 + $0x10] sm:$0xff]
      %v712 = vld [vmem:[%s366 + $0x18] sm:$0xff]
      %v713 = vld [vmem:[%s366 + $0x20] sm:$0xff]
      %v714 = vld [vmem:[%s366 + $0x28] sm:$0xff]
      %v715 = vld [vmem:[%s366 + $0x30] sm:$0xff]
      %v716 = vld [vmem:[%s366 + $0x38] sm:$0xff]
      %v717 = vld [vmem:[%s366 + $0x40] sm:$0xff]
      %v718 = vld [vmem:[%s366 + $0x48] sm:$0xff]
      %v719 = vld [vmem:[%s366 + $0x50] sm:$0xff]
      %v720 = vand.u32 2147483647, %v709
      %v721 = vand.u32 2147483647, %v710
      %v722 = vand.u32 2147483647, %v711
      %v723 = vand.u32 2147483647, %v712
      %v724 = vand.u32 2147483647, %v713
      %v725 = vand.u32 2147483647, %v714
      %v726 = vand.u32 2147483647, %v715
      %v727 = vand.u32 2147483647, %v716
      %v728 = vand.u32 2147483647, %v717
      %v729 = vand.u32 2147483647, %v718
      %v730 = vand.u32 2147483647, %v719
      %v731 = vmin.f32 %v720, 0.499999
      %v732 = vmin.f32 %v721, 0.499999
      %v733 = vmin.f32 %v722, 0.499999
      %v734 = vmin.f32 %v723, 0.499999
      %v735 = vmin.f32 %v724, 0.499999
      %v736 = vmin.f32 %v725, 0.499999
      %v737 = vmin.f32 %v726, 0.499999
      %v738 = vmin.f32 %v727, 0.499999
      %v739 = vmin.f32 %v728, 0.499999
      %v740 = vmin.f32 %v729, 0.499999
      %v741 = vmin.f32 %v730, 0.499999
      %v742 = vmul.f32 %v731, 2.0
      %v743 = vmul.f32 %v732, 2.0
      %v744 = vmul.f32 %v733, 2.0
      %v745 = vmul.f32 %v734, 2.0
      %v746 = vmul.f32 %v735, 2.0
      %v747 = vmul.f32 %v736, 2.0
      %v748 = vmul.f32 %v737, 2.0
      %v749 = vmul.f32 %v738, 2.0
      %v750 = vmul.f32 %v739, 2.0
      %v751 = vmul.f32 %v740, 2.0
      %v752 = vmul.f32 %v741, 2.0
      %v753 = vsub.f32 1.0, %v742
      %v754 = vsub.f32 1.0, %v743
      %v755 = vsub.f32 1.0, %v744
      %v756 = vsub.f32 1.0, %v745
      %v757 = vsub.f32 1.0, %v746
      %v758 = vsub.f32 1.0, %v747
      %v759 = vsub.f32 1.0, %v748
      %v760 = vsub.f32 1.0, %v749
      %v761 = vsub.f32 1.0, %v750
      %v762 = vsub.f32 1.0, %v751
      %v763 = vsub.f32 1.0, %v752
      %v764 = vlog2.pop %v753
      %v765 = vmul.f32 %v764, 0.6931472
      %v766 = vlog2.pop %v754
      %v767 = vmul.f32 %v766, 0.6931472
      %v768 = vlog2.pop %v755
      %v769 = vmul.f32 %v768, 0.6931472
      %v770 = vlog2.pop %v756
      %v771 = vmul.f32 %v770, 0.6931472
      %v772 = vlog2.pop %v757
      %v773 = vmul.f32 %v772, 0.6931472
      %v774 = vlog2.pop %v758
      %v775 = vmul.f32 %v774, 0.6931472
      %v776 = vlog2.pop %v759
      %v777 = vmul.f32 %v776, 0.6931472
      %v778 = vlog2.pop %v760
      %v779 = vmul.f32 %v778, 0.6931472
      %v780 = vlog2.pop %v761
      %v781 = vmul.f32 %v780, 0.6931472
      %v782 = vlog2.pop %v762
      %v783 = vmul.f32 %v782, 0.6931472
      %v784 = vlog2.pop %v763
      %v785 = vmul.f32 %v784, 0.6931472
      %v786 = vsub.f32 0.0, %v765
      %v787 = vsub.f32 0.0, %v767
      %v788 = vsub.f32 0.0, %v769
      %v789 = vsub.f32 0.0, %v771
      %v790 = vsub.f32 0.0, %v773
      %v791 = vsub.f32 0.0, %v775
      %v792 = vsub.f32 0.0, %v777
      %v793 = vsub.f32 0.0, %v779
      %v794 = vsub.f32 0.0, %v781
      %v795 = vsub.f32 0.0, %v783
      %v796 = vsub.f32 0.0, %v785
      %vm797 = vcmp.ge.f32.partialorder %v709, 0.0
      %vm798 = vcmp.ge.f32.partialorder %v710, 0.0
      %vm799 = vcmp.ge.f32.partialorder %v711, 0.0
      %vm800 = vcmp.ge.f32.partialorder %v712, 0.0
      %vm801 = vcmp.ge.f32.partialorder %v713, 0.0
      %vm802 = vcmp.ge.f32.partialorder %v714, 0.0
      %vm803 = vcmp.ge.f32.partialorder %v715, 0.0
      %vm804 = vcmp.ge.f32.partialorder %v716, 0.0
      %vm805 = vcmp.ge.f32.partialorder %v717, 0.0
      %vm806 = vcmp.ge.f32.partialorder %v718, 0.0
      %vm807 = vcmp.ge.f32.partialorder %v719, 0.0
      %v808 = vsel %vm797, 1.0, -1.0
      %v809 = vsel %vm798, 1.0, -1.0
      %v810 = vsel %vm799, 1.0, -1.0
      %v811 = vsel %vm800, 1.0, -1.0
      %v812 = vsel %vm801, 1.0, -1.0
      %v813 = vsel %vm802, 1.0, -1.0
      %v814 = vsel %vm803, 1.0, -1.0
      %v815 = vsel %vm804, 1.0, -1.0
      %v816 = vsel %vm805, 1.0, -1.0
      %v817 = vsel %vm806, 1.0, -1.0
      %v818 = vsel %vm807, 1.0, -1.0
      %v821 = vlaneseq
      %v822 = vshrl.u32 %v821, 7
      %v823 = vsub.s32 0, %v822
      %v824 = vrot.slane %v707, %v823
      %v825 = vlaneseq
      %v826 = vshrl.u32 %v825, 7
      %v827 = vsub.s32 1, %v826
      %v828 = vrot.slane %v707, %v827
      %v829 = vlaneseq
      %v830 = vshrl.u32 %v829, 7
      %v831 = vsub.s32 2, %v830
      %v832 = vrot.slane %v707, %v831
      %v833 = vlaneseq
      %v834 = vshrl.u32 %v833, 7
      %v835 = vsub.s32 3, %v834
      %v836 = vrot.slane %v707, %v835
      %v837 = vlaneseq
      %v838 = vshrl.u32 %v837, 7
      %v839 = vsub.s32 4, %v838
      %v840 = vrot.slane %v707, %v839
      %v841 = vlaneseq
      %v842 = vshrl.u32 %v841, 7
      %v843 = vsub.s32 5, %v842
      %v844 = vrot.slane %v707, %v843
      %v845 = vlaneseq
      %v846 = vshrl.u32 %v845, 7
      %v847 = vsub.s32 6, %v846
      %v848 = vrot.slane %v707, %v847
      %v849 = vlaneseq
      %v850 = vshrl.u32 %v849, 7
      %v851 = vsub.s32 7, %v850
      %v852 = vrot.slane %v707, %v851
      %v853 = vlaneseq
      %v854 = vshrl.u32 %v853, 7
      %v855 = vsub.s32 0, %v854
      %v856 = vrot.slane %v708, %v855
      %v857 = vlaneseq
      %v858 = vshrl.u32 %v857, 7
      %v859 = vsub.s32 1, %v858
      %v860 = vrot.slane %v708, %v859
      %v861 = vlaneseq
      %v862 = vshrl.u32 %v861, 7
      %v863 = vsub.s32 2, %v862
      %v864 = vrot.slane %v708, %v863
      %v876 = vmul.f32 %v824, %v808
      %v877 = vmul.f32 %v828, %v809
      %v878 = vmul.f32 %v832, %v810
      %v879 = vmul.f32 %v836, %v811
      %v880 = vmul.f32 %v840, %v812
      %v881 = vmul.f32 %v844, %v813
      %v882 = vmul.f32 %v848, %v814
      %v883 = vmul.f32 %v852, %v815
      %v884 = vmul.f32 %v856, %v816
      %v885 = vmul.f32 %v860, %v817
      %v886 = vmul.f32 %v864, %v818
      %v887 = vmul.f32 %v876, %v786
      %v888 = vmul.f32 %v877, %v787
      %v889 = vmul.f32 %v878, %v788
      %v890 = vmul.f32 %v879, %v789
      %v891 = vmul.f32 %v880, %v790
      %v892 = vmul.f32 %v881, %v791
      %v893 = vmul.f32 %v882, %v792
      %v894 = vmul.f32 %v883, %v793
      %v895 = vmul.f32 %v884, %v794
      %v896 = vmul.f32 %v885, %v795
      %v897 = vmul.f32 %v886, %v796
      %v900 = vlaneseq
      %v901 = vshrl.u32 %v900, 7
      %v902 = vsub.s32 0, %v901
      %v903 = vrot.slane %v705, %v902
      %v904 = vlaneseq
      %v905 = vshrl.u32 %v904, 7
      %v906 = vsub.s32 1, %v905
      %v907 = vrot.slane %v705, %v906
      %v908 = vlaneseq
      %v909 = vshrl.u32 %v908, 7
      %v910 = vsub.s32 2, %v909
      %v911 = vrot.slane %v705, %v910
      %v912 = vlaneseq
      %v913 = vshrl.u32 %v912, 7
      %v914 = vsub.s32 3, %v913
      %v915 = vrot.slane %v705, %v914
      %v916 = vlaneseq
      %v917 = vshrl.u32 %v916, 7
      %v918 = vsub.s32 4, %v917
      %v919 = vrot.slane %v705, %v918
      %v920 = vlaneseq
      %v921 = vshrl.u32 %v920, 7
      %v922 = vsub.s32 5, %v921
      %v923 = vrot.slane %v705, %v922
      %v924 = vlaneseq
      %v925 = vshrl.u32 %v924, 7
      %v926 = vsub.s32 6, %v925
      %v927 = vrot.slane %v705, %v926
      %v928 = vlaneseq
      %v929 = vshrl.u32 %v928, 7
      %v930 = vsub.s32 7, %v929
      %v931 = vrot.slane %v705, %v930
      %v932 = vlaneseq
      %v933 = vshrl.u32 %v932, 7
      %v934 = vsub.s32 0, %v933
      %v935 = vrot.slane %v706, %v934
      %v936 = vlaneseq
      %v937 = vshrl.u32 %v936, 7
      %v938 = vsub.s32 1, %v937
      %v939 = vrot.slane %v706, %v938
      %v940 = vlaneseq
      %v941 = vshrl.u32 %v940, 7
      %v942 = vsub.s32 2, %v941
      %v943 = vrot.slane %v706, %v942
      %v955 = vadd.f32 %v903, %v887
      %v956 = vadd.f32 %v907, %v888
      %v957 = vadd.f32 %v911, %v889
      %v958 = vadd.f32 %v915, %v890
      %v959 = vadd.f32 %v919, %v891
      %v960 = vadd.f32 %v923, %v892
      %v961 = vadd.f32 %v927, %v893
      %v962 = vadd.f32 %v931, %v894
      %v963 = vadd.f32 %v935, %v895
      %v964 = vadd.f32 %v939, %v896
      %v965 = vadd.f32 %v943, %v897
      %v966 = vand.u32 2147483647, %v955
      %v967 = vand.u32 2147483647, %v956
      %v968 = vand.u32 2147483647, %v957
      %v969 = vand.u32 2147483647, %v958
      %v970 = vand.u32 2147483647, %v959
      %v971 = vand.u32 2147483647, %v960
      %v972 = vand.u32 2147483647, %v961
      %v973 = vand.u32 2147483647, %v962
      %v974 = vand.u32 2147483647, %v963
      %v975 = vand.u32 2147483647, %v964
      %v976 = vand.u32 2147483647, %v965
      %v977 = vsub.f32 %v966, %v786
      %v978 = vsub.f32 %v967, %v787
      %v979 = vsub.f32 %v968, %v788
      %v980 = vsub.f32 %v969, %v789
      %v981 = vsub.f32 %v970, %v790
      %v982 = vsub.f32 %v971, %v791
      %v983 = vsub.f32 %v972, %v792
      %v984 = vsub.f32 %v973, %v793
      %v985 = vsub.f32 %v974, %v794
      %v986 = vsub.f32 %v975, %v795
      %v987 = vsub.f32 %v976, %v796
      %v988 = vadd.f32 %v977, %v978
      %v989 = vadd.f32 %v988, %v979
      %v990 = vadd.f32 %v989, %v980
      %v991 = vadd.f32 %v990, %v981
      %v992 = vadd.f32 %v991, %v982
      %v993 = vadd.f32 %v992, %v983
      %v994 = vadd.f32 %v993, %v984
      %v995 = vadd.f32 %v994, %v985
      %v996 = vadd.f32 %v995, %v986
      %vm997 = vcmask 351232
      %v998 = vsel %vm997, %v987, 0.0
      %v999 = vadd.f32 %v996, %v998
      %1000 = vadd.xlane.f32.xlu0 %v999
      %v1001 = vpop.xlane.xlu0 %1000
      %v1002 = vrot.slane %v1001, 4
      %v1003 = vadd.f32 %v1001, %v1002
      %v1004 = vrot.slane %v1003, 2
      %v1005 = vadd.f32 %v1003, %v1004
      %v1006 = vrot.slane %v1005, 1
      %v1007 = vadd.f32 %v1005, %v1006
      %v1008 = vadd.f32 %v1007, 0.0
      %v1009 = vlog2.pop %v707
      %v1010 = vmul.f32 %v1009, 0.6931472
      %v1011 = vlog2.pop %v708
      %v1012 = vmul.f32 %v1011, 0.6931472
      %v1015 = vlaneseq
      %v1016 = vshrl.u32 %v1015, 7
      %v1017 = vsub.s32 0, %v1016
      %v1018 = vrot.slane %v1010, %v1017
      %v1019 = vlaneseq
      %v1020 = vshrl.u32 %v1019, 7
      %v1021 = vsub.s32 1, %v1020
      %v1022 = vrot.slane %v1010, %v1021
      %v1023 = vlaneseq
      %v1024 = vshrl.u32 %v1023, 7
      %v1025 = vsub.s32 2, %v1024
      %v1026 = vrot.slane %v1010, %v1025
      %v1027 = vlaneseq
      %v1028 = vshrl.u32 %v1027, 7
      %v1029 = vsub.s32 3, %v1028
      %v1030 = vrot.slane %v1010, %v1029
      %v1031 = vlaneseq
      %v1032 = vshrl.u32 %v1031, 7
      %v1033 = vsub.s32 4, %v1032
      %v1034 = vrot.slane %v1010, %v1033
      %v1035 = vlaneseq
      %v1036 = vshrl.u32 %v1035, 7
      %v1037 = vsub.s32 5, %v1036
      %v1038 = vrot.slane %v1010, %v1037
      %v1039 = vlaneseq
      %v1040 = vshrl.u32 %v1039, 7
      %v1041 = vsub.s32 6, %v1040
      %v1042 = vrot.slane %v1010, %v1041
      %v1043 = vlaneseq
      %v1044 = vshrl.u32 %v1043, 7
      %v1045 = vsub.s32 7, %v1044
      %v1046 = vrot.slane %v1010, %v1045
      %v1047 = vlaneseq
      %v1048 = vshrl.u32 %v1047, 7
      %v1049 = vsub.s32 0, %v1048
      %v1050 = vrot.slane %v1012, %v1049
      %v1051 = vlaneseq
      %v1052 = vshrl.u32 %v1051, 7
      %v1053 = vsub.s32 1, %v1052
      %v1054 = vrot.slane %v1012, %v1053
      %v1055 = vlaneseq
      %v1056 = vshrl.u32 %v1055, 7
      %v1057 = vsub.s32 2, %v1056
      %v1058 = vrot.slane %v1012, %v1057
      %v1070 = vsel %vm679, %v1018, 0.0
      %v1071 = vsel %vm679, %v1022, 0.0
      %v1072 = vadd.f32 %v1070, %v1071
      %v1073 = vsel %vm679, %v1026, 0.0
      %v1074 = vadd.f32 %v1072, %v1073
      %v1075 = vsel %vm679, %v1030, 0.0
      %v1076 = vadd.f32 %v1074, %v1075
      %v1077 = vsel %vm679, %v1034, 0.0
      %v1078 = vadd.f32 %v1076, %v1077
      %v1079 = vsel %vm679, %v1038, 0.0
      %v1080 = vadd.f32 %v1078, %v1079
      %v1081 = vsel %vm679, %v1042, 0.0
      %v1082 = vadd.f32 %v1080, %v1081
      %v1083 = vsel %vm679, %v1046, 0.0
      %v1084 = vadd.f32 %v1082, %v1083
      %v1085 = vsel %vm679, %v1050, 0.0
      %v1086 = vadd.f32 %v1084, %v1085
      %v1087 = vsel %vm679, %v1054, 0.0
      %v1088 = vadd.f32 %v1086, %v1087
      %v1089 = vsel %vm699, %v1058, 0.0
      %v1090 = vadd.f32 %v1088, %v1089
      %1091 = vadd.xlane.f32.xlu0 %v1090
      %v1092 = vpop.xlane.xlu0 %1091
      %v1093 = vmul.f32 %v1092, 8.0
      %v1094 = vsub.f32 %v1008, %v1093
      %v1095 = vmul.f32 %v1094, 4.724112e-05
      %v1096 = vld [vmem:[%s379] sm:$0x77]
      %v1097 = vld [vmem:[%s379 + $0x8] sm:$0x77]
      %v1100 = vrot.slane %v1096, 7
      %v1101 = vrot.slane %v1097, 7
      %v1104 = vsub.f32 %v1096, %v1100
      %v1105 = vsub.f32 %v1097, %v1101
      %v1106 = vand.u32 2147483647, %v1104
      %v1107 = vand.u32 2147483647, %v1105
      %v1110 = vcombine.high %v1106, %v1106
      %v1111 = vcombine.high %v1107, %v1107
      %vm1114 = vcmask 1042433
      %v1115 = vsel %vm1114, %v1106, 0.0
      %v1116 = vsel %vm1114, %v1110, 0.0
      %v1117 = vadd.f32 %v1115, %v1116
      %v1118 = vsel %vm1114, %v1107, 0.0
      %v1119 = vadd.f32 %v1117, %v1118
      %vm1120 = vcmask 460801
      %v1121 = vsel %vm1120, %v1111, 0.0
      %v1122 = vadd.f32 %v1119, %v1121
      %1123 = vadd.xlane.f32.xlu0 %v1122
      %v1124 = vpop.xlane.xlu0 %1123
      %v1126 = vrot.slane %v1124, 1
      %vm1128 = vcmask 1041408
      %v1129 = vsel %vm1128, %v1126, 0.0
      %v1130 = vrot.slane %v1129, 4
      %v1131 = vadd.f32 %v1129, %v1130
      %v1132 = vrot.slane %v1131, 2
      %v1133 = vadd.f32 %v1131, %v1132
      %v1134 = vrot.slane %v1133, 1
      %v1135 = vadd.f32 %v1133, %v1134
      %1136 = vrot.lane.b32.xlu0 %v1096, 21
      %v1137 = vpop.permute.xlu0 %1136
      %1138 = vrot.lane.b32.xlu0 %v1097, 21
      %v1139 = vpop.permute.xlu0 %1138
      %v1140 = vrot.slane %v1137, 4
      %v1141 = vrot.slane %v1139, 4
      %vm1142 = vcmask 171008
      %v1143 = vsel %vm1142, %v1140, %v1137
      %v1144 = vsel %vm520, %v1140, %v1141
      %v1145 = vsel %vm1142, %v1144, %v1139
      %v1148 = vsub.f32 %v1096, %v1143
      %v1149 = vsub.f32 %v1097, %v1145
      %v1150 = vand.u32 2147483647, %v1148
      %v1151 = vand.u32 2147483647, %v1149
      %v1154 = vcombine.high %v1150, %v1150
      %v1155 = vcombine.high %v1151, %v1151
      %1156 = vrot.lane.b32.xlu0 %v1150, 107
      %v1157 = vpop.permute.xlu0 %1156
      %1158 = vrot.lane.b32.xlu0 %v1154, 107
      %v1159 = vpop.permute.xlu0 %1158
      %1160 = vrot.lane.b32.xlu0 %v1151, 107
      %v1161 = vpop.permute.xlu0 %1160
      %1162 = vrot.lane.b32.xlu0 %v1155, 107
      %v1163 = vpop.permute.xlu0 %1162
      %vm1164 = vcmask 875520
      %v1165 = vsel %vm1164, %v1157, %v1159
      %v1166 = vsel %vm1164, %v1159, %v1161
      %v1167 = vsel %vm1164, %v1161, %v1163
      %vm1172 = vcmask 1042432
      %v1173 = vsel %vm1172, %v1165, 0.0
      %v1174 = vsel %vm1172, %v1166, 0.0
      %v1175 = vadd.f32 %v1173, %v1174
      %v1176 = vsel %vm1172, %v1167, 0.0
      %v1177 = vadd.f32 %v1175, %v1176
      %vm1178 = vcmask 288768
      %v1179 = vsel %vm1178, %v1163, 0.0
      %v1180 = vadd.f32 %v1177, %v1179
      %1181 = vadd.xlane.f32.xlu0 %v1180
      %v1182 = vpop.xlane.xlu0 %1181
      %v1183 = vsel %vm1172, %v1182, 0.0
      %v1184 = vrot.slane %v1183, 4
      %v1185 = vadd.f32 %v1183, %v1184
      %v1186 = vrot.slane %v1185, 2
      %v1187 = vadd.f32 %v1185, %v1186
      %v1188 = vrot.slane %v1187, 1
      %v1189 = vadd.f32 %v1187, %v1188
      %1190 = vrot.lane.b32.xlu0 %v1096, 1
      %v1191 = vpop.permute.xlu0 %1190
      %1192 = vrot.lane.b32.xlu0 %v1097, 1
      %v1193 = vpop.permute.xlu0 %1192
      %v1194 = vrot.slane %v1191, 4
      %v1195 = vrot.slane %v1193, 4
      %vm1196 = vcmask 7168
      %v1197 = vsel %vm1196, %v1194, %v1191
      %v1198 = vsel %vm520, %v1194, %v1195
      %v1199 = vsel %vm1196, %v1198, %v1193
      %v1202 = vsub.f32 %v1096, %v1197
      %v1203 = vsub.f32 %v1097, %v1199
      %v1204 = vand.u32 2147483647, %v1202
      %v1205 = vand.u32 2147483647, %v1203
      %v1206 = vlaneseq
      %v1207 = vand.u32 %v1206, 127
      %v1208 = vadd.s32 %v1207, 128
      %v1209 = vadd.s32 %v1207, 256
      %v1210 = vadd.s32 %v1207, 384
      %v1211 = vcvt.s32.f32 %v1207
      %v1212 = vcvt.s32.f32 %v1208
      %v1213 = vcvt.s32.f32 %v1209
      %v1214 = vcvt.s32.f32 %v1210
      %v1215 = vadd.f32 %v1211, 0.5
      %v1216 = vadd.f32 %v1212, 0.5
      %v1217 = vadd.f32 %v1213, 0.5
      %v1218 = vadd.f32 %v1214, 0.5
      %v1219 = vmul.f32 %v1215, 0.04761905
      %v1220 = vmul.f32 %v1216, 0.04761905
      %v1221 = vmul.f32 %v1217, 0.04761905
      %v1222 = vmul.f32 %v1218, 0.04761905
      %v1223 = vfloor.f32 %v1219
      %v1224 = vfloor.f32 %v1220
      %v1225 = vfloor.f32 %v1221
      %v1226 = vfloor.f32 %v1222
      %v1227 = vmul.f32 %v1223, 21.0
      %v1228 = vmul.f32 %v1224, 21.0
      %v1229 = vmul.f32 %v1225, 21.0
      %v1230 = vmul.f32 %v1226, 21.0
      %v1231 = vsub.f32 %v1211, %v1227
      %v1232 = vsub.f32 %v1212, %v1228
      %v1233 = vsub.f32 %v1213, %v1229
      %v1234 = vsub.f32 %v1214, %v1230
      %vm1235 = vcmp.lt.f32.partialorder %v1231, 19.5
      %vm1236 = vcmp.lt.f32.partialorder %v1232, 19.5
      %vm1237 = vcmp.lt.f32.partialorder %v1233, 19.5
      %vm1238 = vcmp.lt.f32.partialorder %v1234, 19.5
      %v1241 = vcombine.high %v1204, %v1204
      %v1242 = vcombine.high %v1205, %v1205
      %1243 = vrot.lane.b32.xlu0 %v1204, 127
      %v1244 = vpop.permute.xlu0 %1243
      %1245 = vrot.lane.b32.xlu0 %v1241, 127
      %v1246 = vpop.permute.xlu0 %1245
      %1247 = vrot.lane.b32.xlu0 %v1205, 127
      %v1248 = vpop.permute.xlu0 %1247
      %1249 = vrot.lane.b32.xlu0 %v1242, 127
      %v1250 = vpop.permute.xlu0 %1249
      %vm1251 = vcmask 1039360
      %v1252 = vsel %vm1251, %v1244, %v1246
      %v1253 = vsel %vm1251, %v1246, %v1248
      %v1254 = vsel %vm1251, %v1248, %v1250
      %v1259 = vsel %vm1235, %v1252, 0.0
      %v1260 = vsel %vm1236, %v1253, 0.0
      %v1261 = vsel %vm1237, %v1254, 0.0
      %v1262 = vsel %vm1238, %v1250, 0.0
      %v1263 = vsel %vm1172, %v1259, 0.0
      %v1264 = vsel %vm1172, %v1260, 0.0
      %v1265 = vadd.f32 %v1263, %v1264
      %v1266 = vsel %vm1172, %v1261, 0.0
      %v1267 = vadd.f32 %v1265, %v1266
      %vm1268 = vcmask 452608
      %v1269 = vsel %vm1268, %v1262, 0.0
      %v1270 = vadd.f32 %v1267, %v1269
      %1271 = vadd.xlane.f32.xlu0 %v1270
      %v1272 = vpop.xlane.xlu0 %1271
      %v1273 = vsel %vm1172, %v1272, 0.0
      %v1274 = vrot.slane %v1273, 4
      %v1275 = vadd.f32 %v1273, %v1274
      %v1276 = vrot.slane %v1275, 2
      %v1277 = vadd.f32 %v1275, %v1276
      %v1278 = vrot.slane %v1277, 1
      %v1279 = vadd.f32 %v1277, %v1278
      %v1280 = vadd.f32 %v1135, %v1189
      %v1281 = vadd.f32 %v1280, %v1279
      %vm1282 = vcmp.eq.s32.totalorder %v1207, 0
      %v1283 = vsel %vm1282, %v704, 0.0
      %vm1284 = vcmp.eq.s32.totalorder %v1207, 1
      %v1285 = vsel %vm1284, %v1095, %v1283
      %vm1286 = vcmp.eq.s32.totalorder %v1207, 2
      %v1287 = vsel %vm1286, %v1281, %v1285
      %1288 = vst [vmem:[%s382] sm:$0x1] %v1287
      %p1289 = scmp.lt.s32.totalorder %s18, 1
      %s1290 = scalar_select %p1289, %s18, 1
      %s1291 = scalar_lea.vmem %s7, %s1290
      // Predicated region
      $region49: #{laplace_loss_forward.1} parent=47 // pred_check
        %p1292 = pneg %p218
      $region50: #{laplace_loss_forward.1} parent=47 // pred_check_branch
        %1294 = sbr.rel (%p1292) target = $region52
      $region51: #{laplace_loss_forward.1} parent=47 // pred_region
        _
      $region52: #{laplace_loss_forward.1} parent=47 // pred_fallthru
        _
    $region48: #{laplace_loss_forward.1} parent=5 // pred_fallthru
      _
    %p1295 = scmp.le.s32.totalorder 2, %s13
    // Predicated region
    $region53: #{laplace_loss_forward.1} parent=5 // pred_check
      %p1296 = pneg %p1295
    $region54: #{laplace_loss_forward.1} parent=5 // pred_check_branch
      %1298 = sbr.rel (%p1296) target = $region56
    $region55: #{laplace_loss_forward.1} parent=5 // pred_region
      %s1299 = ssub.s32 %s13, 2
      // Predicated region
      $region57: #{laplace_loss_forward.1} parent=55 // pred_check
        %p1300 = pneg %p224
      $region58: #{laplace_loss_forward.1} parent=55 // pred_check_branch
        %1302 = sbr.rel (%p1300) target = $region60
      $region59: #{laplace_loss_forward.1} parent=55 // pred_region
        %p1303 = scmp.lt.s32.totalorder %s19, 1
        %s1304 = scalar_select %p1303, %s19, 1
        %s1305 = scalar_lea.vmem %s7, %s1304
      $region60: #{laplace_loss_forward.1} parent=55 // pred_fallthru
        _
    $region56: #{laplace_loss_forward.1} parent=5 // pred_fallthru
      _
  $region6: #{laplace_loss_forward.1} parent=0 // loop_footer
    %s17 = sadd.s32 1, %s13
  $region7: #{laplace_loss_forward.1} parent=0 // loop_footer_branch
    %12 = sbr.rel target = $region3
  $region8: #{laplace_loss_forward.1} parent=0 // loop_exit
    _

</llo_original>
